<compile_context>
chip_gen: v7x
topology: tpu7x:2x2x1
jax: 0.10.0
libtpu: 0.0.40
codegen_flags: <defaults>
</compile_context>

<pallas_src>
import functools

import jax
import jax.numpy as jnp
from jax import lax
from jax.experimental import pallas as pl
from jax.experimental.pallas import tpu as pltpu


def _mlp_kernel(x_ref, w1_ref, b1_ref, w2_ref, b2_ref, w3_ref, b3_ref,
                w4_ref, b4_ref, o_ref, *, chunk, compute_dtype):
    """Fused 4-layer MLP over one (bt, in_f) row-major batch tile.

    Activations are kept feature-major (features on sublanes, batch on lanes) and the
    whole layer stack runs per `chunk` batch columns so intermediates stay in vregs.
    """
    bt = x_ref.shape[0]
    n_chunks = bt // chunk          # static python int
    cd = compute_dtype

    # Hoisted out of the chunk loop: weight loads + lane-broadcast of biases (once/step).
    w1 = w1_ref[...].astype(cd)
    w2 = w2_ref[...].astype(cd)
    w3 = w3_ref[...].astype(cd)
    w4 = w4_ref[...].astype(cd)
    b1 = jnp.broadcast_to(b1_ref[...], (w1.shape[0], chunk))
    b2 = jnp.broadcast_to(b2_ref[...], (w2.shape[0], chunk))
    b3 = jnp.broadcast_to(b3_ref[...], (w3.shape[0], chunk))
    b4 = jnp.broadcast_to(b4_ref[...], (w4.shape[0], chunk))

    # A[m,k] . B[n,k] -> [m,n]   (contract feature dims; rhs effectively transposed).
    dn_bt = (((1,), (1,)), ((), ()))

    def body(c, carry):
        off = pl.multiple_of(c * chunk, chunk)
        xc = x_ref[pl.ds(off, chunk), :].astype(cd)                        # (chunk, 7)
        # Layer 1: (32, 7) x (chunk, 7)^T -> (32, chunk); feature-major from here on.
        h = lax.dot_general(w1, xc, dn_bt, preferred_element_type=jnp.float32) + b1
        h = jnp.tanh(h.astype(cd))
        h = jnp.dot(w2, h, preferred_element_type=jnp.float32) + b2       # (64, chunk)
        h = jnp.tanh(h.astype(cd))
        h = jnp.dot(w3, h, preferred_element_type=jnp.float32) + b3       # (16, chunk)
        h = jnp.tanh(h.astype(cd))
        h = jnp.dot(w4, h, preferred_element_type=jnp.float32) + b4       # (1,  chunk)
        o_ref[:, pl.ds(off, chunk)] = h.astype(o_ref.dtype)               # lane-dense store
        return carry

    lax.fori_loop(0, n_chunks, body, 0)


def _round_up(n, m):
    return ((n + m - 1) // m) * m


def mlp_forward(x, params, *, batch_tile=4096, chunk=256,
                compute_dtype=jnp.float32, min_steps=2):
    """x: [B, input_size] float32.  params: layer -> (W [out,in], b [out,1]).

    Returns [B, output_size] float32.  The batch is padded only to a multiple of `chunk`
    and split into lane-dense tiles sized so that (a) the per-step pipeline overhead is
    amortized and (b) there are >= `min_steps` grid steps whenever enough rows exist
    (keeps both v7x TensorCores busy).
    """
    B, in_f = x.shape
    w1, b1 = params["fc1"]
    w2, b2 = params["fc2"]
    w3, b3 = params["fc3"]
    w4, b4 = params["fc4"]
    out_f = w4.shape[0]

    chunk = max(128, _round_up(chunk, 128))
    target_tile = _round_up(max(batch_tile, chunk), chunk)

    # Pad only to a chunk multiple; derive the tile from a target step count.
    b_pad0 = _round_up(B, chunk)
    n_steps = pl.cdiv(b_pad0, target_tile)
    if b_pad0 >= min_steps * chunk:
        n_steps = max(n_steps, min_steps)
    bt = _round_up(pl.cdiv(b_pad0, n_steps), chunk)
    n_steps = pl.cdiv(b_pad0, bt)
    b_pad = n_steps * bt

    if b_pad != B:
        x = jnp.pad(x, ((0, b_pad - B), (0, 0)))

    kernel = functools.partial(_mlp_kernel, chunk=chunk, compute_dtype=compute_dtype)

    def resident(arr):
        # Full-array block, constant index_map -> stays VMEM-resident across grid steps.
        return pl.BlockSpec(arr.shape, lambda i: (0, 0))

    out_t = pl.pallas_call(
        kernel,
        out_shape=jax.ShapeDtypeStruct((out_f, b_pad), jnp.float32),
        grid_spec=pl.GridSpec(
            grid=(n_steps,),
            in_specs=[
                pl.BlockSpec((bt, in_f), lambda i: (i, 0)),         # row-major x tile
                resident(w1), resident(b1),
                resident(w2), resident(b2),
                resident(w3), resident(b3),
                resident(w4), resident(b4),
            ],
            out_specs=pl.BlockSpec((out_f, bt), lambda i: (0, i)),  # (1, bt) lane-dense
        ),
        compiler_params=pltpu.CompilerParams(
            dimension_semantics=("parallel",)),                     # shards steps across TCs
    )(x, w1, b1, w2, b2, w3, b3, w4, b4)

    # (out_f, B_pad) -> (B, out_f); transposing a size-1 leading dim is trivially cheap.
    return out_t.T[:B]


def init_params(key, input_size=7, output_size=1):
    """PyTorch nn.Linear-style init: U(-1/sqrt(fan_in), 1/sqrt(fan_in)).
    Weights stored as [out, in], biases as [out, 1]."""
    dims = [(input_size, 32), (32, 64), (64, 16), (16, output_size)]
    names = ["fc1", "fc2", "fc3", "fc4"]
    params = {}
    for name, (fan_in, fan_out) in zip(names, dims):
        key, kw, kb = jax.random.split(key, 3)
        bound = 1.0 / jnp.sqrt(jnp.float32(fan_in))
        w = jax.random.uniform(kw, (fan_out, fan_in), jnp.float32, -bound, bound)
        b = jax.random.uniform(kb, (fan_out, 1), jnp.float32, -bound, bound)
        params[name] = (w, b)
    return params


def mlp_reference(x, params):
    """Pure-JAX reference (standard batch-major math) for correctness checks."""
    w1, b1 = params["fc1"]
    w2, b2 = params["fc2"]
    w3, b3 = params["fc3"]
    w4, b4 = params["fc4"]
    h = jnp.tanh(x @ w1.T + b1.T)
    h = jnp.tanh(h @ w2.T + b2.T)
    h = jnp.tanh(h @ w3.T + b3.T)
    return h @ w4.T + b4.T


if __name__ == "__main__":
    key = jax.random.PRNGKey(0)
    key, k1, k2, k3 = jax.random.split(key, 4)

    input_size, output_size = 7, 1
    params = init_params(key, input_size, output_size)

    # 1) Small batch: single grid step, single inner chunk.
    x1 = jax.random.normal(k1, (8, input_size), jnp.float32)
    o1 = jax.block_until_ready(mlp_forward(x1, params))
    r1 = mlp_reference(x1, params)
    assert o1.shape == (8, output_size)
    assert jnp.allclose(o1, r1, atol=1e-5, rtol=1e-5), "mismatch (small batch)"

    # 2) Ragged batch + multi-step grid (3 steps of bt=256): exercises padding drop and
    #    the >=2-step (both-TensorCores) path.
    x2 = jax.random.normal(k2, (600, input_size), jnp.float32)
    o2 = jax.block_until_ready(mlp_forward(x2, params, batch_tile=256))
    r2 = mlp_reference(x2, params)
    assert o2.shape == (600, output_size)
    assert jnp.allclose(o2, r2, atol=1e-5, rtol=1e-5), "mismatch (ragged multi-step)"

    # 3) Multi-chunk inner loop (bt=512 -> 2 chunks of 256 per grid step).
    x3 = jax.random.normal(k3, (1024, input_size), jnp.float32)
    o3 = jax.block_until_ready(mlp_forward(x3, params, batch_tile=512))
    r3 = mlp_reference(x3, params)
    assert o3.shape == (1024, output_size)
    assert jnp.allclose(o3, r3, atol=1e-5, rtol=1e-5), "mismatch (multi-chunk)"

    # 4) Optional bf16 hidden path (bf16 MXU operands + bf16 tanh, f32 accumulation) --
    #    the v6e/v7x speed option; loose tolerance since bf16 keeps ~3 significant digits.
    o4 = jax.block_until_ready(mlp_forward(x2, params, compute_dtype=jnp.bfloat16))
    assert o4.shape == (600, output_size)
    assert jnp.allclose(o4, r2, atol=5e-2, rtol=5e-2), "mismatch (bf16 hidden path)"

    print("KERNEL_OK")
</pallas_src>

<mosaic_0001>
module attributes {stable_mosaic.version = 11 : i64} {
  func.func @_mlp_kernel(%arg0: i32, %arg1: memref<256x7xf32, #tpu.memory_space<vmem>>, %arg2: memref<32x7xf32, #tpu.memory_space<vmem>>, %arg3: memref<32x1xf32, #tpu.memory_space<vmem>>, %arg4: memref<64x32xf32, #tpu.memory_space<vmem>>, %arg5: memref<64x1xf32, #tpu.memory_space<vmem>>, %arg6: memref<16x64xf32, #tpu.memory_space<vmem>>, %arg7: memref<16x1xf32, #tpu.memory_space<vmem>>, %arg8: memref<1x16xf32, #tpu.memory_space<vmem>>, %arg9: memref<1x1xf32, #tpu.memory_space<vmem>>, %arg10: memref<1x256xf32, #tpu.memory_space<vmem>>) attributes {dimension_semantics = [#tpu.dimension_semantics<parallel>], iteration_bounds = array<i64: 1>, scalar_prefetch = 0 : i64, scratch_operands = 0 : i64, tpu.core_type = #tpu.core_type<tc>, window_params = [{transform_indices = @transform_0, window_bounds = array<i64: 256, 7>}, {pipeline_mode = #tpu.pipeline_mode<synchronous>, transform_indices = @transform_1, window_bounds = array<i64: 32, 7>}, {pipeline_mode = #tpu.pipeline_mode<synchronous>, transform_indices = @transform_2, window_bounds = array<i64: 32, 1>}, {pipeline_mode = #tpu.pipeline_mode<synchronous>, transform_indices = @transform_3, window_bounds = array<i64: 64, 32>}, {pipeline_mode = #tpu.pipeline_mode<synchronous>, transform_indices = @transform_4, window_bounds = array<i64: 64, 1>}, {pipeline_mode = #tpu.pipeline_mode<synchronous>, transform_indices = @transform_5, window_bounds = array<i64: 16, 64>}, {pipeline_mode = #tpu.pipeline_mode<synchronous>, transform_indices = @transform_6, window_bounds = array<i64: 16, 1>}, {pipeline_mode = #tpu.pipeline_mode<synchronous>, transform_indices = @transform_7, window_bounds = array<i64: 1, 16>}, {pipeline_mode = #tpu.pipeline_mode<synchronous>, transform_indices = @transform_8, window_bounds = array<i64: 1, 1>}, {transform_indices = @transform_9, window_bounds = array<i64: 1, 256>}]} {
    %c0 = arith.constant 0 : index
    %c0_0 = arith.constant 0 : index
    %0 = vector.load %arg2[%c0, %c0_0] : memref<32x7xf32, #tpu.memory_space<vmem>>, vector<32x7xf32>
    %c0_1 = arith.constant 0 : index
    %c0_2 = arith.constant 0 : index
    %1 = vector.load %arg4[%c0_1, %c0_2] : memref<64x32xf32, #tpu.memory_space<vmem>>, vector<64x32xf32>
    %c0_3 = arith.constant 0 : index
    %c0_4 = arith.constant 0 : index
    %2 = vector.load %arg6[%c0_3, %c0_4] : memref<16x64xf32, #tpu.memory_space<vmem>>, vector<16x64xf32>
    %c0_5 = arith.constant 0 : index
    %c0_6 = arith.constant 0 : index
    %3 = vector.load %arg8[%c0_5, %c0_6] : memref<1x16xf32, #tpu.memory_space<vmem>>, vector<1x16xf32>
    %c0_7 = arith.constant 0 : index
    %c0_8 = arith.constant 0 : index
    %4 = vector.load %arg3[%c0_7, %c0_8] : memref<32x1xf32, #tpu.memory_space<vmem>>, vector<32x1xf32>
    %5 = vector.shape_cast %4 : vector<32x1xf32> to vector<32x1xf32>
    %6 = vector.broadcast %5 : vector<32x1xf32> to vector<32x256xf32>
    %c0_9 = arith.constant 0 : index
    %c0_10 = arith.constant 0 : index
    %7 = vector.load %arg5[%c0_9, %c0_10] : memref<64x1xf32, #tpu.memory_space<vmem>>, vector<64x1xf32>
    %8 = vector.shape_cast %7 : vector<64x1xf32> to vector<64x1xf32>
    %9 = vector.broadcast %8 : vector<64x1xf32> to vector<64x256xf32>
    %c0_11 = arith.constant 0 : index
    %c0_12 = arith.constant 0 : index
    %10 = vector.load %arg7[%c0_11, %c0_12] : memref<16x1xf32, #tpu.memory_space<vmem>>, vector<16x1xf32>
    %11 = vector.shape_cast %10 : vector<16x1xf32> to vector<16x1xf32>
    %12 = vector.broadcast %11 : vector<16x1xf32> to vector<16x256xf32>
    %c0_13 = arith.constant 0 : index
    %c0_14 = arith.constant 0 : index
    %13 = vector.load %arg9[%c0_13, %c0_14] : memref<1x1xf32, #tpu.memory_space<vmem>>, vector<1x1xf32>
    %14 = vector.shape_cast %13 : vector<1x1xf32> to vector<1x1xf32>
    %15 = vector.broadcast %14 : vector<1x1xf32> to vector<1x256xf32>
    %c0_i32 = arith.constant 0 : i32
    %c256_i32 = arith.constant 256 : i32
    %16 = arith.muli %c0_i32, %c256_i32 : i32
    %17 = tpu.assume_multiple %16, 256 : i32
    %18 = arith.index_cast %17 : i32 to index
    %c0_15 = arith.constant 0 : index
    %19 = vector.load %arg1[%18, %c0_15] : memref<256x7xf32, #tpu.memory_space<vmem>>, vector<256x7xf32>
    %cst = arith.constant dense<0.000000e+00> : vector<32x256xf32>
    %20 = tpu.matmul %0, %19, %cst {dimension_numbers = #tpu.dot_dimension_numbers<[1], [1], [0], [0], [0, 0, 1, 0], [], []>} : vector<32x7xf32>, vector<256x7xf32>, vector<32x256xf32> -> vector<32x256xf32>
    %21 = arith.addf %20, %6 : vector<32x256xf32>
    %22 = math.tanh %21 : vector<32x256xf32>
    %cst_16 = arith.constant dense<0.000000e+00> : vector<64x256xf32>
    %23 = tpu.matmul %1, %22, %cst_16 {dimension_numbers = #tpu.dot_dimension_numbers<[1], [0], [0], [1], [0, 0, 1, 1], [], []>} : vector<64x32xf32>, vector<32x256xf32>, vector<64x256xf32> -> vector<64x256xf32>
    %24 = arith.addf %23, %9 : vector<64x256xf32>
    %25 = math.tanh %24 : vector<64x256xf32>
    %cst_17 = arith.constant dense<0.000000e+00> : vector<16x256xf32>
    %26 = tpu.matmul %2, %25, %cst_17 {dimension_numbers = #tpu.dot_dimension_numbers<[1], [0], [0], [1], [0, 0, 1, 1], [], []>} : vector<16x64xf32>, vector<64x256xf32>, vector<16x256xf32> -> vector<16x256xf32>
    %27 = arith.addf %26, %12 : vector<16x256xf32>
    %28 = math.tanh %27 : vector<16x256xf32>
    %cst_18 = arith.constant dense<0.000000e+00> : vector<1x256xf32>
    %29 = tpu.matmul %3, %28, %cst_18 {dimension_numbers = #tpu.dot_dimension_numbers<[1], [0], [0], [1], [0, 0, 1, 1], [], []>} : vector<1x16xf32>, vector<16x256xf32>, vector<1x256xf32> -> vector<1x256xf32>
    %30 = arith.addf %29, %15 : vector<1x256xf32>
    %c0_19 = arith.constant 0 : index
    %31 = arith.index_cast %17 : i32 to index
    %32 = vector.load %arg10[%c0_19, %31] : memref<1x256xf32, #tpu.memory_space<vmem>>, vector<1x256xf32>
    tpu.vector_store %arg10[%c0_19, %31], %30 {strides = array<i32>} : memref<1x256xf32, #tpu.memory_space<vmem>>, vector<1x256xf32>,
    %c1_i32 = arith.constant 1 : i32
    return
  }
  func.func @transform_0(%arg0: i32) -> (i32, i32) {
    %c0_i32 = arith.constant 0 : i32
    %c0_i32_0 = arith.constant 0 : i32
    return %arg0, %c0_i32 : i32, i32
  }
  func.func @transform_1(%arg0: i32) -> (i32, i32) {
    %c0_i32 = arith.constant 0 : i32
    %c0_i32_0 = arith.constant 0 : i32
    %c0_i32_1 = arith.constant 0 : i32
    return %c0_i32, %c0_i32_0 : i32, i32
  }
  func.func @transform_2(%arg0: i32) -> (i32, i32) {
    %c0_i32 = arith.constant 0 : i32
    %c0_i32_0 = arith.constant 0 : i32
    %c0_i32_1 = arith.constant 0 : i32
    return %c0_i32, %c0_i32_0 : i32, i32
  }
  func.func @transform_3(%arg0: i32) -> (i32, i32) {
    %c0_i32 = arith.constant 0 : i32
    %c0_i32_0 = arith.constant 0 : i32
    %c0_i32_1 = arith.constant 0 : i32
    return %c0_i32, %c0_i32_0 : i32, i32
  }
  func.func @transform_4(%arg0: i32) -> (i32, i32) {
    %c0_i32 = arith.constant 0 : i32
    %c0_i32_0 = arith.constant 0 : i32
    %c0_i32_1 = arith.constant 0 : i32
    return %c0_i32, %c0_i32_0 : i32, i32
  }
  func.func @transform_5(%arg0: i32) -> (i32, i32) {
    %c0_i32 = arith.constant 0 : i32
    %c0_i32_0 = arith.constant 0 : i32
    %c0_i32_1 = arith.constant 0 : i32
    return %c0_i32, %c0_i32_0 : i32, i32
  }
  func.func @transform_6(%arg0: i32) -> (i32, i32) {
    %c0_i32 = arith.constant 0 : i32
    %c0_i32_0 = arith.constant 0 : i32
    %c0_i32_1 = arith.constant 0 : i32
    return %c0_i32, %c0_i32_0 : i32, i32
  }
  func.func @transform_7(%arg0: i32) -> (i32, i32) {
    %c0_i32 = arith.constant 0 : i32
    %c0_i32_0 = arith.constant 0 : i32
    %c0_i32_1 = arith.constant 0 : i32
    return %c0_i32, %c0_i32_0 : i32, i32
  }
  func.func @transform_8(%arg0: i32) -> (i32, i32) {
    %c0_i32 = arith.constant 0 : i32
    %c0_i32_0 = arith.constant 0 : i32
    %c0_i32_1 = arith.constant 0 : i32
    return %c0_i32, %c0_i32_0 : i32, i32
  }
  func.func @transform_9(%arg0: i32) -> (i32, i32) {
    %c0_i32 = arith.constant 0 : i32
    %c0_i32_0 = arith.constant 0 : i32
    return %c0_i32, %arg0 : i32, i32
  }
}

</mosaic_0001>

<llo_original>
// kernel: tpu_custom_call.1
$region0: #{tpu_custom_call.1}
  #allocation0 [shape = 'u32[]', space=smem, size = 0x4, offset = 0x4, fixed_abs, tag = 'smem constant byte address 0x4 - core index']
  #allocation1 [shape = 'u32[144,128]{1,0:T(1,128)}', space=vmem, size = 0x12000, scoped, tag = 'internal scratch']
  #allocation2 [shape = 'f32[1,1]{1,0:T(1,128)S(1)}', space=vmem, size = 0x200, scoped, tag = 'scoped memory for tpu_custom_call.1']
  %s0 = inlined_call_operand.vmem [shape: f32[256,7], index: 0, kind: input, shape index: {}]
  %s1 = inlined_call_operand.vmem [shape: f32[32,7], index: 1, kind: input, shape index: {}]
  %s2 = inlined_call_operand.vmem [shape: f32[32,1], index: 2, kind: input, shape index: {}]
  %s3 = inlined_call_operand.vmem [shape: f32[64,32], index: 3, kind: input, shape index: {}]
  %s4 = inlined_call_operand.vmem [shape: f32[64,1], index: 4, kind: input, shape index: {}]
  %s5 = inlined_call_operand.vmem [shape: f32[16,64], index: 5, kind: input, shape index: {}]
  %s6 = inlined_call_operand.vmem [shape: f32[16,1], index: 6, kind: input, shape index: {}]
  %s7 = inlined_call_operand.vmem [shape: f32[1,16], index: 7, kind: input, shape index: {}]
  %s8 = inlined_call_operand.<no memory space> [shape: f32[1,1], index: 8, kind: input, shape index: {}]
  %s9 = inlined_call_operand.hbm [shape: f32[1,256], index: 9, kind: output, shape index: {}]
  %s10 = sld [smem:[#allocation0]]
  $region46: #{tpu_custom_call.1} parent=0
    _
  %s12 = ssub.s32 1, %s10
  %s13 = scalar_select 0, %s12, %s10
  %v14 = vstv %s8
  %15 = vst [vmem:[#allocation2] sm:$0x1] %v14
  $region1: #{tpu_custom_call.1} parent=0
    #allocation3 [shape = 'u8[1024]{0}', space=vmem, size = 0x400, scoped, tag = 'output window, operand 0, single buffered']
    #allocation4 [shape = 's32[1]{0}', space=sflag, size = 0x4, scoped, tag = 'scoped memory for tpu_custom_call.1']
    %16 = vsyncpa [#allocation4], 0
    // Predicated region
    $region2: #{tpu_custom_call.1} parent=1 // pred_check
      _
    $region3: #{tpu_custom_call.1} parent=1 // pred_check_branch
      %18 = sbr.rel (0) target = $region5
    $region4: #{tpu_custom_call.1} parent=1 // pred_region
      _
    $region5: #{tpu_custom_call.1} parent=1 // pred_fallthru
      _
    // Predicated region
    $region6: #{tpu_custom_call.1} parent=1 // pred_check
      _
    $region7: #{tpu_custom_call.1} parent=1 // pred_check_branch
      %20 = sbr.rel (0) target = $region9
    $region8: #{tpu_custom_call.1} parent=1 // pred_region
      _
    $region9: #{tpu_custom_call.1} parent=1 // pred_fallthru
      _
    // Predicated region
    $region10: #{tpu_custom_call.1} parent=1 // pred_check
      _
    $region11: #{tpu_custom_call.1} parent=1 // pred_check_branch
      %22 = sbr.rel (0) target = $region13
    $region12: #{tpu_custom_call.1} parent=1 // pred_region
      _
    $region13: #{tpu_custom_call.1} parent=1 // pred_fallthru
      _
    // Predicated region
    $region14: #{tpu_custom_call.1} parent=1 // pred_check
      _
    $region15: #{tpu_custom_call.1} parent=1 // pred_check_branch
      %24 = sbr.rel (0) target = $region17
    $region16: #{tpu_custom_call.1} parent=1 // pred_region
      _
    $region17: #{tpu_custom_call.1} parent=1 // pred_fallthru
      _
    // Predicated region
    $region18: #{tpu_custom_call.1} parent=1 // pred_check
      _
    $region19: #{tpu_custom_call.1} parent=1 // pred_check_branch
      %26 = sbr.rel (0) target = $region21
    $region20: #{tpu_custom_call.1} parent=1 // pred_region
      _
    $region21: #{tpu_custom_call.1} parent=1 // pred_fallthru
      _
    // Predicated region
    $region22: #{tpu_custom_call.1} parent=1 // pred_check
      _
    $region23: #{tpu_custom_call.1} parent=1 // pred_check_branch
      %28 = sbr.rel (0) target = $region25
    $region24: #{tpu_custom_call.1} parent=1 // pred_region
      _
    $region25: #{tpu_custom_call.1} parent=1 // pred_fallthru
      _
    // Predicated region
    $region26: #{tpu_custom_call.1} parent=1 // pred_check
      _
    $region27: #{tpu_custom_call.1} parent=1 // pred_check_branch
      %30 = sbr.rel (0) target = $region29
    $region28: #{tpu_custom_call.1} parent=1 // pred_region
      _
    $region29: #{tpu_custom_call.1} parent=1 // pred_fallthru
      _
    // Predicated region
    $region30: #{tpu_custom_call.1} parent=1 // pred_check
      _
    $region31: #{tpu_custom_call.1} parent=1 // pred_check_branch
      %32 = sbr.rel (0) target = $region33
    $region32: #{tpu_custom_call.1} parent=1 // pred_region
      _
    $region33: #{tpu_custom_call.1} parent=1 // pred_fallthru
      _
    // Predicated region
    $region34: #{tpu_custom_call.1} parent=1 // pred_check
      _
    $region35: #{tpu_custom_call.1} parent=1 // pred_check_branch
      %34 = sbr.rel (0) target = $region37
    $region36: #{tpu_custom_call.1} parent=1 // pred_region
      _
    $region37: #{tpu_custom_call.1} parent=1 // pred_fallthru
      _
    %v35 = vld [vmem:[%s1] sm:$0xff]
    %v36 = vld [vmem:[%s1 + $0x8] sm:$0xff]
    %v37 = vld [vmem:[%s1 + $0x10] sm:$0xff]
    %v38 = vld [vmem:[%s1 + $0x18] sm:$0xff]
    %v39 = vld [vmem:[%s3] sm:$0xff]
    %v40 = vld [vmem:[%s3 + $0x8] sm:$0xff]
    %v41 = vld [vmem:[%s3 + $0x10] sm:$0xff]
    %v42 = vld [vmem:[%s3 + $0x18] sm:$0xff]
    %v43 = vld [vmem:[%s3 + $0x20] sm:$0xff]
    %v44 = vld [vmem:[%s3 + $0x28] sm:$0xff]
    %v45 = vld [vmem:[%s3 + $0x30] sm:$0xff]
    %v46 = vld [vmem:[%s3 + $0x38] sm:$0xff]
    %v47 = vld [vmem:[%s5] sm:$0xff]
    %v48 = vld [vmem:[%s5 + $0x8] sm:$0xff]
    %v49 = vld [vmem:[%s7] sm:$0x1]
    %v50 = vld [vmem:[%s2] sm:$0xff]
    %v51 = vld [vmem:[%s2 + $0x8] sm:$0xff]
    %v52 = vld [vmem:[%s2 + $0x10] sm:$0xff]
    %v53 = vld [vmem:[%s2 + $0x18] sm:$0xff]
    %55 = vset.pattern.permute.xlu0 0
    %56 = vperm.xlu0 %55, %v50
    %v57 = vpop.permute.xlu0 %56
    %60 = vset.pattern.permute.xlu0 0
    %61 = vperm.xlu0 %60, %v51
    %v62 = vpop.permute.xlu0 %61
    %65 = vset.pattern.permute.xlu0 0
    %66 = vperm.xlu0 %65, %v52
    %v67 = vpop.permute.xlu0 %66
    %70 = vset.pattern.permute.xlu0 0
    %71 = vperm.xlu0 %70, %v53
    %v72 = vpop.permute.xlu0 %71
    %v74 = vld [vmem:[%s4] sm:$0xff]
    %v75 = vld [vmem:[%s4 + $0x8] sm:$0xff]
    %v76 = vld [vmem:[%s4 + $0x10] sm:$0xff]
    %v77 = vld [vmem:[%s4 + $0x18] sm:$0xff]
    %v78 = vld [vmem:[%s4 + $0x20] sm:$0xff]
    %v79 = vld [vmem:[%s4 + $0x28] sm:$0xff]
    %v80 = vld [vmem:[%s4 + $0x30] sm:$0xff]
    %v81 = vld [vmem:[%s4 + $0x38] sm:$0xff]
    %83 = vset.pattern.permute.xlu0 0
    %84 = vperm.xlu0 %83, %v74
    %v85 = vpop.permute.xlu0 %84
    %88 = vset.pattern.permute.xlu0 0
    %89 = vperm.xlu0 %88, %v75
    %v90 = vpop.permute.xlu0 %89
    %93 = vset.pattern.permute.xlu0 0
    %94 = vperm.xlu0 %93, %v76
    %v95 = vpop.permute.xlu0 %94
    %98 = vset.pattern.permute.xlu0 0
    %99 = vperm.xlu0 %98, %v77
    %v100 = vpop.permute.xlu0 %99
    %103 = vset.pattern.permute.xlu0 0
    %104 = vperm.xlu0 %103, %v78
    %v105 = vpop.permute.xlu0 %104
    %108 = vset.pattern.permute.xlu0 0
    %109 = vperm.xlu0 %108, %v79
    %v110 = vpop.permute.xlu0 %109
    %113 = vset.pattern.permute.xlu0 0
    %114 = vperm.xlu0 %113, %v80
    %v115 = vpop.permute.xlu0 %114
    %118 = vset.pattern.permute.xlu0 0
    %119 = vperm.xlu0 %118, %v81
    %v120 = vpop.permute.xlu0 %119
    %v122 = vld [vmem:[%s6] sm:$0xff]
    %v123 = vld [vmem:[%s6 + $0x8] sm:$0xff]
    %125 = vset.pattern.permute.xlu0 0
    %126 = vperm.xlu0 %125, %v122
    %v127 = vpop.permute.xlu0 %126
    %130 = vset.pattern.permute.xlu0 0
    %131 = vperm.xlu0 %130, %v123
    %v132 = vpop.permute.xlu0 %131
    %v134 = vld [vmem:[#allocation2] sm:$0x1]
    %136 = vset.pattern.permute.xlu0 0
    %137 = vperm.xlu0 %136, %v134
    %v138 = vpop.permute.xlu0 %137
    %v140 = vlaneseq
    %v141 = vshrl.u32 %v140, 7
    %v142 = vsub.s32 0, %v141
    %v143 = vrot.slane %v138, %v142
    %v144 = vld [vmem:[%s0] sm:$0xff]
    %v145 = vld [vmem:[%s0 + $0x8] sm:$0xff]
    %v146 = vld [vmem:[%s0 + $0x10] sm:$0xff]
    %v147 = vld [vmem:[%s0 + $0x18] sm:$0xff]
    %v148 = vld [vmem:[%s0 + $0x20] sm:$0xff]
    %v149 = vld [vmem:[%s0 + $0x28] sm:$0xff]
    %v150 = vld [vmem:[%s0 + $0x30] sm:$0xff]
    %v151 = vld [vmem:[%s0 + $0x38] sm:$0xff]
    %v152 = vld [vmem:[%s0 + $0x40] sm:$0xff]
    %v153 = vld [vmem:[%s0 + $0x48] sm:$0xff]
    %v154 = vld [vmem:[%s0 + $0x50] sm:$0xff]
    %v155 = vld [vmem:[%s0 + $0x58] sm:$0xff]
    %v156 = vld [vmem:[%s0 + $0x60] sm:$0xff]
    %v157 = vld [vmem:[%s0 + $0x68] sm:$0xff]
    %v158 = vld [vmem:[%s0 + $0x70] sm:$0xff]
    %v159 = vld [vmem:[%s0 + $0x78] sm:$0xff]
    %v160 = vld [vmem:[%s0 + $0x80] sm:$0xff]
    %v161 = vld [vmem:[%s0 + $0x88] sm:$0xff]
    %v162 = vld [vmem:[%s0 + $0x90] sm:$0xff]
    %v163 = vld [vmem:[%s0 + $0x98] sm:$0xff]
    %v164 = vld [vmem:[%s0 + $0xa0] sm:$0xff]
    %v165 = vld [vmem:[%s0 + $0xa8] sm:$0xff]
    %v166 = vld [vmem:[%s0 + $0xb0] sm:$0xff]
    %v167 = vld [vmem:[%s0 + $0xb8] sm:$0xff]
    %v168 = vld [vmem:[%s0 + $0xc0] sm:$0xff]
    %v169 = vld [vmem:[%s0 + $0xc8] sm:$0xff]
    %v170 = vld [vmem:[%s0 + $0xd0] sm:$0xff]
    %v171 = vld [vmem:[%s0 + $0xd8] sm:$0xff]
    %v172 = vld [vmem:[%s0 + $0xe0] sm:$0xff]
    %v173 = vld [vmem:[%s0 + $0xe8] sm:$0xff]
    %v174 = vld [vmem:[%s0 + $0xf0] sm:$0xff]
    %v175 = vld [vmem:[%s0 + $0xf8] sm:$0xff]
    %vm176 = vcmask 56320
    %v178 = vsel %vm176, %v35, 0
    %v181 = vsel %vm176, %v36, 0
    %v184 = vsel %vm176, %v37, 0
    %v187 = vsel %vm176, %v38, 0
    %v190 = vsel %vm176, %v144, 0
    %v193 = vsel %vm176, %v145, 0
    %v196 = vsel %vm176, %v146, 0
    %v199 = vsel %vm176, %v147, 0
    %v202 = vsel %vm176, %v148, 0
    %v205 = vsel %vm176, %v149, 0
    %v208 = vsel %vm176, %v150, 0
    %v211 = vsel %vm176, %v151, 0
    %v214 = vsel %vm176, %v152, 0
    %v217 = vsel %vm176, %v153, 0
    %v220 = vsel %vm176, %v154, 0
    %v223 = vsel %vm176, %v155, 0
    %v226 = vsel %vm176, %v156, 0
    %v229 = vsel %vm176, %v157, 0
    %v232 = vsel %vm176, %v158, 0
    %v235 = vsel %vm176, %v159, 0
    %v238 = vsel %vm176, %v160, 0
    %v241 = vsel %vm176, %v161, 0
    %v244 = vsel %vm176, %v162, 0
    %v247 = vsel %vm176, %v163, 0
    %v250 = vsel %vm176, %v164, 0
    %v253 = vsel %vm176, %v165, 0
    %v256 = vsel %vm176, %v166, 0
    %v259 = vsel %vm176, %v167, 0
    %v262 = vsel %vm176, %v168, 0
    %v265 = vsel %vm176, %v169, 0
    %v268 = vsel %vm176, %v170, 0
    %v271 = vsel %vm176, %v171, 0
    %v274 = vsel %vm176, %v172, 0
    %v277 = vsel %vm176, %v173, 0
    %v280 = vsel %vm176, %v174, 0
    %v283 = vsel %vm176, %v175, 0
    %285 = vmatprep.subr.mxu0 0.0
    %286 = vmatpush1.xpose.msra.mxu0 %v190
    %287 = vmatprep.subr.mxu0 0.0
    %288 = vmatpush1.xpose.msra.mxu0 %v193
    %289 = vmatprep.subr.mxu0 0.0
    %290 = vmatpush1.xpose.msra.mxu0 %v196
    %291 = vmatprep.subr.mxu0 0.0
    %292 = vmatpush1.xpose.msra.mxu0 %v199
    %293 = vmatprep.subr.mxu0 0.0
    %294 = vmatpush1.xpose.msra.mxu0 %v202
    %295 = vmatprep.subr.mxu0 0.0
    %296 = vmatpush1.xpose.msra.mxu0 %v205
    %297 = vmatprep.subr.mxu0 0.0
    %298 = vmatpush1.xpose.msra.mxu0 %v208
    %299 = vmatprep.subr.mxu0 0.0
    %300 = vmatpush1.xpose.msra.mxu0 %v211
    %301 = vmatprep.subr.mxu0 0.0
    %302 = vmatpush1.xpose.msra.mxu0 %v214
    %303 = vmatprep.subr.mxu0 0.0
    %304 = vmatpush1.xpose.msra.mxu0 %v217
    %305 = vmatprep.subr.mxu0 0.0
    %306 = vmatpush1.xpose.msra.mxu0 %v220
    %307 = vmatprep.subr.mxu0 0.0
    %308 = vmatpush1.xpose.msra.mxu0 %v223
    %309 = vmatprep.subr.mxu0 0.0
    %310 = vmatpush1.xpose.msra.mxu0 %v226
    %311 = vmatprep.subr.mxu0 0.0
    %312 = vmatpush1.xpose.msra.mxu0 %v229
    %313 = vmatprep.subr.mxu0 0.0
    %314 = vmatpush1.xpose.msra.mxu0 %v232
    %315 = vmatprep.subr.mxu0 0.0
    %316 = vmatpush1.xpose.msra.mxu0 %v235
    %317 = vmatprep.subr.mxu0 0.0
    %318 = vmatpush1.xpose.msra.mxu0 %v238
    %319 = vmatprep.subr.mxu0 0.0
    %320 = vmatpush1.xpose.msra.mxu0 %v241
    %321 = vmatprep.subr.mxu0 0.0
    %322 = vmatpush1.xpose.msra.mxu0 %v244
    %323 = vmatprep.subr.mxu0 0.0
    %324 = vmatpush1.xpose.msra.mxu0 %v247
    %325 = vmatprep.subr.mxu0 0.0
    %326 = vmatpush1.xpose.msra.mxu0 %v250
    %327 = vmatprep.subr.mxu0 0.0
    %328 = vmatpush1.xpose.msra.mxu0 %v253
    %329 = vmatprep.subr.mxu0 0.0
    %330 = vmatpush1.xpose.msra.mxu0 %v256
    %331 = vmatprep.subr.mxu0 0.0
    %332 = vmatpush1.xpose.msra.mxu0 %v259
    %333 = vmatprep.subr.mxu0 0.0
    %334 = vmatpush1.xpose.msra.mxu0 %v262
    %335 = vmatprep.subr.mxu0 0.0
    %336 = vmatpush1.xpose.msra.mxu0 %v265
    %337 = vmatprep.subr.mxu0 0.0
    %338 = vmatpush1.xpose.msra.mxu0 %v268
    %339 = vmatprep.subr.mxu0 0.0
    %340 = vmatpush1.xpose.msra.mxu0 %v271
    %341 = vmatprep.subr.mxu0 0.0
    %342 = vmatpush1.xpose.msra.mxu0 %v274
    %343 = vmatprep.subr.mxu0 0.0
    %344 = vmatpush1.xpose.msra.mxu0 %v277
    %345 = vmatprep.subr.mxu0 0.0
    %346 = vmatpush1.xpose.msra.mxu0 %v280
    %347 = vmatprep.subr.mxu0 0.0
    %348 = vmatpush1.xpose.msra.mxu0 %v283
    %349 = vmatprep.mubr.f32.mxu0 0.0
    %350 = vmatmul.mubr.f32.gmra.mrb[0].mxu0 %v178
    %v351 = vpop.f32.mrb[0].mxu0
    %v352 = vadd.f32 %v57, %v351
    %v353 = vpop.f32.mrb[0].mxu0
    %v354 = vadd.f32 %v57, %v353
    %355 = vmatprep.mubr.f32.mxu0 0.0
    %356 = vmatmul.mubr.f32.gmra.mrb[0].mxu0 %v181
    %v357 = vpop.f32.mrb[0].mxu0
    %v358 = vadd.f32 %v62, %v357
    %v359 = vpop.f32.mrb[0].mxu0
    %v360 = vadd.f32 %v62, %v359
    %361 = vmatprep.mubr.f32.mxu0 0.0
    %362 = vmatmul.mubr.f32.gmra.mrb[0].mxu0 %v184
    %v363 = vpop.f32.mrb[0].mxu0
    %v364 = vadd.f32 %v67, %v363
    %v365 = vpop.f32.mrb[0].mxu0
    %v366 = vadd.f32 %v67, %v365
    %367 = vmatprep.mubr.f32.mxu0 0.0
    %368 = vmatmul.mubr.f32.gmra.mrb[0].mxu0 %v187
    %v369 = vpop.f32.mrb[0].mxu0
    %v370 = vadd.f32 %v72, %v369
    %v371 = vpop.f32.mrb[0].mxu0
    %v372 = vadd.f32 %v72, %v371
    %373 = vdwg.mxu0
    %v374 = vtanh.pop %v352
    %v375 = vtanh.pop %v354
    %v376 = vtanh.pop %v358
    %v377 = vtanh.pop %v360
    %v378 = vtanh.pop %v364
    %v379 = vtanh.pop %v366
    %v380 = vtanh.pop %v370
    %v381 = vtanh.pop %v372
    %vm382 = vcmask 261120
    %v384 = vsel %vm382, %v39, 0
    %v387 = vsel %vm382, %v40, 0
    %v390 = vsel %vm382, %v41, 0
    %v393 = vsel %vm382, %v42, 0
    %v396 = vsel %vm382, %v43, 0
    %v399 = vsel %vm382, %v44, 0
    %v402 = vsel %vm382, %v45, 0
    %v405 = vsel %vm382, %v46, 0
    %407 = vmatprep.subr.mxu0 %v375
    %408 = vmatpush1.msra.mxu0 %v374
    %409 = vmatprep.subr.mxu0 %v377
    %410 = vmatpush1.msra.mxu0 %v376
    %411 = vmatprep.subr.mxu0 %v379
    %412 = vmatpush1.msra.mxu0 %v378
    %413 = vmatprep.subr.mxu0 %v381
    %414 = vmatpush1.msra.mxu0 %v380
    %415 = vmatprep.subr.mxu0 0.0
    %416 = vmatpush1.msra.mxu0 0.0
    %417 = vmatprep.subr.mxu0 0.0
    %418 = vmatpush1.msra.mxu0 0.0
    %419 = vmatprep.subr.mxu0 0.0
    %420 = vmatpush1.msra.mxu0 0.0
    %421 = vmatprep.subr.mxu0 0.0
    %422 = vmatpush1.msra.mxu0 0.0
    %423 = vmatprep.subr.mxu0 0.0
    %424 = vmatpush1.msra.mxu0 0.0
    %425 = vmatprep.subr.mxu0 0.0
    %426 = vmatpush1.msra.mxu0 0.0
    %427 = vmatprep.subr.mxu0 0.0
    %428 = vmatpush1.msra.mxu0 0.0
    %429 = vmatprep.subr.mxu0 0.0
    %430 = vmatpush1.msra.mxu0 0.0
    %431 = vmatprep.subr.mxu0 0.0
    %432 = vmatpush1.msra.mxu0 0.0
    %433 = vmatprep.subr.mxu0 0.0
    %434 = vmatpush1.msra.mxu0 0.0
    %435 = vmatprep.subr.mxu0 0.0
    %436 = vmatpush1.msra.mxu0 0.0
    %437 = vmatprep.subr.mxu0 0.0
    %438 = vmatpush1.msra.mxu0 0.0
    %439 = vmatprep.subr.mxu0 0.0
    %440 = vmatpush1.msra.mxu0 0.0
    %441 = vmatprep.subr.mxu0 0.0
    %442 = vmatpush1.msra.mxu0 0.0
    %443 = vmatprep.subr.mxu0 0.0
    %444 = vmatpush1.msra.mxu0 0.0
    %445 = vmatprep.subr.mxu0 0.0
    %446 = vmatpush1.msra.mxu0 0.0
    %447 = vmatprep.subr.mxu0 0.0
    %448 = vmatpush1.msra.mxu0 0.0
    %449 = vmatprep.subr.mxu0 0.0
    %450 = vmatpush1.msra.mxu0 0.0
    %451 = vmatprep.subr.mxu0 0.0
    %452 = vmatpush1.msra.mxu0 0.0
    %453 = vmatprep.subr.mxu0 0.0
    %454 = vmatpush1.msra.mxu0 0.0
    %455 = vmatprep.subr.mxu0 0.0
    %456 = vmatpush1.msra.mxu0 0.0
    %457 = vmatprep.subr.mxu0 0.0
    %458 = vmatpush1.msra.mxu0 0.0
    %459 = vmatprep.subr.mxu0 0.0
    %460 = vmatpush1.msra.mxu0 0.0
    %461 = vmatprep.subr.mxu0 0.0
    %462 = vmatpush1.msra.mxu0 0.0
    %463 = vmatprep.subr.mxu0 0.0
    %464 = vmatpush1.msra.mxu0 0.0
    %465 = vmatprep.subr.mxu0 0.0
    %466 = vmatpush1.msra.mxu0 0.0
    %467 = vmatprep.subr.mxu0 0.0
    %468 = vmatpush1.msra.mxu0 0.0
    %469 = vmatprep.subr.mxu0 0.0
    %470 = vmatpush1.msra.mxu0 0.0
    %471 = vmatprep.mubr.f32.mxu0 0.0
    %472 = vmatmul.mubr.f32.gmra.mrb[0].mxu0 %v384
    %v473 = vpop.f32.mrb[0].mxu0
    %v474 = vadd.f32 %v85, %v473
    %v475 = vpop.f32.mrb[0].mxu0
    %v476 = vadd.f32 %v85, %v475
    %477 = vmatprep.mubr.f32.mxu0 0.0
    %478 = vmatmul.mubr.f32.gmra.mrb[0].mxu0 %v387
    %v479 = vpop.f32.mrb[0].mxu0
    %v480 = vadd.f32 %v90, %v479
    %v481 = vpop.f32.mrb[0].mxu0
    %v482 = vadd.f32 %v90, %v481
    %483 = vmatprep.mubr.f32.mxu0 0.0
    %484 = vmatmul.mubr.f32.gmra.mrb[0].mxu0 %v390
    %v485 = vpop.f32.mrb[0].mxu0
    %v486 = vadd.f32 %v95, %v485
    %v487 = vpop.f32.mrb[0].mxu0
    %v488 = vadd.f32 %v95, %v487
    %489 = vmatprep.mubr.f32.mxu0 0.0
    %490 = vmatmul.mubr.f32.gmra.mrb[0].mxu0 %v393
    %v491 = vpop.f32.mrb[0].mxu0
    %v492 = vadd.f32 %v100, %v491
    %v493 = vpop.f32.mrb[0].mxu0
    %v494 = vadd.f32 %v100, %v493
    %495 = vmatprep.mubr.f32.mxu0 0.0
    %496 = vmatmul.mubr.f32.gmra.mrb[0].mxu0 %v396
    %v497 = vpop.f32.mrb[0].mxu0
    %v498 = vadd.f32 %v105, %v497
    %v499 = vpop.f32.mrb[0].mxu0
    %v500 = vadd.f32 %v105, %v499
    %501 = vmatprep.mubr.f32.mxu0 0.0
    %502 = vmatmul.mubr.f32.gmra.mrb[0].mxu0 %v399
    %v503 = vpop.f32.mrb[0].mxu0
    %v504 = vadd.f32 %v110, %v503
    %v505 = vpop.f32.mrb[0].mxu0
    %v506 = vadd.f32 %v110, %v505
    %507 = vmatprep.mubr.f32.mxu0 0.0
    %508 = vmatmul.mubr.f32.gmra.mrb[0].mxu0 %v402
    %v509 = vpop.f32.mrb[0].mxu0
    %v510 = vadd.f32 %v115, %v509
    %v511 = vpop.f32.mrb[0].mxu0
    %v512 = vadd.f32 %v115, %v511
    %513 = vmatprep.mubr.f32.mxu0 0.0
    %514 = vmatmul.mubr.f32.gmra.mrb[0].mxu0 %v405
    %v515 = vpop.f32.mrb[0].mxu0
    %v516 = vadd.f32 %v120, %v515
    %v517 = vpop.f32.mrb[0].mxu0
    %v518 = vadd.f32 %v120, %v517
    %519 = vdwg.mxu0
    %v520 = vtanh.pop %v474
    %v521 = vtanh.pop %v476
    %v522 = vtanh.pop %v480
    %v523 = vtanh.pop %v482
    %v524 = vtanh.pop %v486
    %v525 = vtanh.pop %v488
    %v526 = vtanh.pop %v492
    %v527 = vtanh.pop %v494
    %v528 = vtanh.pop %v498
    %v529 = vtanh.pop %v500
    %v530 = vtanh.pop %v504
    %v531 = vtanh.pop %v506
    %v532 = vtanh.pop %v510
    %v533 = vtanh.pop %v512
    %v534 = vtanh.pop %v516
    %v535 = vtanh.pop %v518
    %vm536 = vcmask 523264
    %v538 = vsel %vm536, %v47, 0
    %v541 = vsel %vm536, %v48, 0
    %543 = vmatprep.subr.mxu0 %v521
    %544 = vmatpush1.msra.mxu0 %v520
    %545 = vmatprep.subr.mxu0 %v523
    %546 = vmatpush1.msra.mxu0 %v522
    %547 = vmatprep.subr.mxu0 %v525
    %548 = vmatpush1.msra.mxu0 %v524
    %549 = vmatprep.subr.mxu0 %v527
    %550 = vmatpush1.msra.mxu0 %v526
    %551 = vmatprep.subr.mxu0 %v529
    %552 = vmatpush1.msra.mxu0 %v528
    %553 = vmatprep.subr.mxu0 %v531
    %554 = vmatpush1.msra.mxu0 %v530
    %555 = vmatprep.subr.mxu0 %v533
    %556 = vmatpush1.msra.mxu0 %v532
    %557 = vmatprep.subr.mxu0 %v535
    %558 = vmatpush1.msra.mxu0 %v534
    %559 = vmatprep.subr.mxu0 0.0
    %560 = vmatpush1.msra.mxu0 0.0
    %561 = vmatprep.subr.mxu0 0.0
    %562 = vmatpush1.msra.mxu0 0.0
    %563 = vmatprep.subr.mxu0 0.0
    %564 = vmatpush1.msra.mxu0 0.0
    %565 = vmatprep.subr.mxu0 0.0
    %566 = vmatpush1.msra.mxu0 0.0
    %567 = vmatprep.subr.mxu0 0.0
    %568 = vmatpush1.msra.mxu0 0.0
    %569 = vmatprep.subr.mxu0 0.0
    %570 = vmatpush1.msra.mxu0 0.0
    %571 = vmatprep.subr.mxu0 0.0
    %572 = vmatpush1.msra.mxu0 0.0
    %573 = vmatprep.subr.mxu0 0.0
    %574 = vmatpush1.msra.mxu0 0.0
    %575 = vmatprep.subr.mxu0 0.0
    %576 = vmatpush1.msra.mxu0 0.0
    %577 = vmatprep.subr.mxu0 0.0
    %578 = vmatpush1.msra.mxu0 0.0
    %579 = vmatprep.subr.mxu0 0.0
    %580 = vmatpush1.msra.mxu0 0.0
    %581 = vmatprep.subr.mxu0 0.0
    %582 = vmatpush1.msra.mxu0 0.0
    %583 = vmatprep.subr.mxu0 0.0
    %584 = vmatpush1.msra.mxu0 0.0
    %585 = vmatprep.subr.mxu0 0.0
    %586 = vmatpush1.msra.mxu0 0.0
    %587 = vmatprep.subr.mxu0 0.0
    %588 = vmatpush1.msra.mxu0 0.0
    %589 = vmatprep.subr.mxu0 0.0
    %590 = vmatpush1.msra.mxu0 0.0
    %591 = vmatprep.subr.mxu0 0.0
    %592 = vmatpush1.msra.mxu0 0.0
    %593 = vmatprep.subr.mxu0 0.0
    %594 = vmatpush1.msra.mxu0 0.0
    %595 = vmatprep.subr.mxu0 0.0
    %596 = vmatpush1.msra.mxu0 0.0
    %597 = vmatprep.subr.mxu0 0.0
    %598 = vmatpush1.msra.mxu0 0.0
    %599 = vmatprep.subr.mxu0 0.0
    %600 = vmatpush1.msra.mxu0 0.0
    %601 = vmatprep.subr.mxu0 0.0
    %602 = vmatpush1.msra.mxu0 0.0
    %603 = vmatprep.subr.mxu0 0.0
    %604 = vmatpush1.msra.mxu0 0.0
    %605 = vmatprep.subr.mxu0 0.0
    %606 = vmatpush1.msra.mxu0 0.0
    %607 = vmatprep.mubr.f32.mxu0 0.0
    %608 = vmatmul.mubr.f32.gmra.mrb[0].mxu0 %v538
    %v609 = vpop.f32.mrb[0].mxu0
    %v610 = vadd.f32 %v127, %v609
    %v611 = vpop.f32.mrb[0].mxu0
    %v612 = vadd.f32 %v127, %v611
    %613 = vmatprep.mubr.f32.mxu0 0.0
    %614 = vmatmul.mubr.f32.gmra.mrb[0].mxu0 %v541
    %v615 = vpop.f32.mrb[0].mxu0
    %v616 = vadd.f32 %v132, %v615
    %v617 = vpop.f32.mrb[0].mxu0
    %v618 = vadd.f32 %v132, %v617
    %619 = vdwg.mxu0
    %v620 = vtanh.pop %v610
    %v621 = vtanh.pop %v612
    %v622 = vtanh.pop %v616
    %v623 = vtanh.pop %v618
    %vm624 = vcmask 130048
    %v626 = vsel %vm624, %v49, 0
    %628 = vmatprep.subr.mxu0 %v621
    %629 = vmatpush1.msra.mxu0 %v620
    %630 = vmatprep.subr.mxu0 %v623
    %631 = vmatpush1.msra.mxu0 %v622
    %632 = vmatprep.subr.mxu0 0.0
    %633 = vmatpush1.msra.mxu0 0.0
    %634 = vmatprep.subr.mxu0 0.0
    %635 = vmatpush1.msra.mxu0 0.0
    %636 = vmatprep.subr.mxu0 0.0
    %637 = vmatpush1.msra.mxu0 0.0
    %638 = vmatprep.subr.mxu0 0.0
    %639 = vmatpush1.msra.mxu0 0.0
    %640 = vmatprep.subr.mxu0 0.0
    %641 = vmatpush1.msra.mxu0 0.0
    %642 = vmatprep.subr.mxu0 0.0
    %643 = vmatpush1.msra.mxu0 0.0
    %644 = vmatprep.subr.mxu0 0.0
    %645 = vmatpush1.msra.mxu0 0.0
    %646 = vmatprep.subr.mxu0 0.0
    %647 = vmatpush1.msra.mxu0 0.0
    %648 = vmatprep.subr.mxu0 0.0
    %649 = vmatpush1.msra.mxu0 0.0
    %650 = vmatprep.subr.mxu0 0.0
    %651 = vmatpush1.msra.mxu0 0.0
    %652 = vmatprep.subr.mxu0 0.0
    %653 = vmatpush1.msra.mxu0 0.0
    %654 = vmatprep.subr.mxu0 0.0
    %655 = vmatpush1.msra.mxu0 0.0
    %656 = vmatprep.subr.mxu0 0.0
    %657 = vmatpush1.msra.mxu0 0.0
    %658 = vmatprep.subr.mxu0 0.0
    %659 = vmatpush1.msra.mxu0 0.0
    %660 = vmatprep.subr.mxu0 0.0
    %661 = vmatpush1.msra.mxu0 0.0
    %662 = vmatprep.subr.mxu0 0.0
    %663 = vmatpush1.msra.mxu0 0.0
    %664 = vmatprep.subr.mxu0 0.0
    %665 = vmatpush1.msra.mxu0 0.0
    %666 = vmatprep.subr.mxu0 0.0
    %667 = vmatpush1.msra.mxu0 0.0
    %668 = vmatprep.subr.mxu0 0.0
    %669 = vmatpush1.msra.mxu0 0.0
    %670 = vmatprep.subr.mxu0 0.0
    %671 = vmatpush1.msra.mxu0 0.0
    %672 = vmatprep.subr.mxu0 0.0
    %673 = vmatpush1.msra.mxu0 0.0
    %674 = vmatprep.subr.mxu0 0.0
    %675 = vmatpush1.msra.mxu0 0.0
    %676 = vmatprep.subr.mxu0 0.0
    %677 = vmatpush1.msra.mxu0 0.0
    %678 = vmatprep.subr.mxu0 0.0
    %679 = vmatpush1.msra.mxu0 0.0
    %680 = vmatprep.subr.mxu0 0.0
    %681 = vmatpush1.msra.mxu0 0.0
    %682 = vmatprep.subr.mxu0 0.0
    %683 = vmatpush1.msra.mxu0 0.0
    %684 = vmatprep.subr.mxu0 0.0
    %685 = vmatpush1.msra.mxu0 0.0
    %686 = vmatprep.subr.mxu0 0.0
    %687 = vmatpush1.msra.mxu0 0.0
    %688 = vmatprep.subr.mxu0 0.0
    %689 = vmatpush1.msra.mxu0 0.0
    %690 = vmatprep.subr.mxu0 0.0
    %691 = vmatpush1.msra.mxu0 0.0
    %692 = vmatprep.mubr.f32.mxu0 0.0
    %693 = vmatmul.mubr.f32.gmra.mrb[0].mxu0 %v626
    %v694 = vpop.f32.mrb[0].mxu0
    %v695 = vadd.f32 %v143, %v694
    %v696 = vpop.f32.mrb[0].mxu0
    %v697 = vadd.f32 %v143, %v696
    %698 = vdwg.mxu0
    %v701 = vcombine.low %v695, %v697
    %v703 = vunpack.c.l.s4 1966171168
    %v704 = vunpack.c.0.s8 %v703
    %v705 = vlaneseq
    %v706 = vshrl.u32 %v705, 7
    %v707 = vsub.s32 %v704, %v706
    %v708 = vrot.slane %v701, %v707
    %v710 = vunpack.c.l.s4 1966171168
    %v711 = vunpack.c.0.s8 %v710
    %v712 = vlaneseq
    %v713 = vshrl.u32 %v712, 7
    %v714 = vsub.s32 %v711, %v713
    %v715 = vrot.slane %v708, %v714
    %v717 = vlaneseq
    %vm718 = vcmp.ge.s32.totalorder %v717, 0
    %vm719 = vcmp.lt.s32.totalorder %v717, 256
    %vm720 = vmand %vm718, %vm719
    %721 = vst.msk [vmem:[#allocation3] sm:$0x3] %vm720, %v715
    // Predicated region
    $region38: #{tpu_custom_call.1} parent=1 // pred_check
      _
    $region39: #{tpu_custom_call.1} parent=1 // pred_check_branch
      %723 = sbr.rel (0) target = $region41
    $region40: #{tpu_custom_call.1} parent=1 // pred_region
      %s725 = ssub.s32 32, 32
      %726 = vsyncadd [#allocation4], %s725
      %s728 = sshll.u32 [#allocation3], 4
      %s729 = int_to_ptr.vmem [resolvable:$true] %s728
      %731 = dma.vmem_to_hbm [thread:$0]  %s729, 32, %s9, [#allocation4]
    $region41: #{tpu_custom_call.1} parent=1 // pred_fallthru
      _
    // Predicated region
    $region42: #{tpu_custom_call.1} parent=1 // pred_check
      _
    $region43: #{tpu_custom_call.1} parent=1 // pred_check_branch
      %733 = sbr.rel (0) target = $region45
    $region44: #{tpu_custom_call.1} parent=1 // pred_region
      %734 = dma.done [#allocation4], 32
    $region45: #{tpu_custom_call.1} parent=1 // pred_fallthru
      _
    %735 = vsyncpa [#allocation4], 1

</llo_original>
